<compile_context>
chip_gen: v5e
topology: v5e:2x2
jax: 0.10.0
libtpu: 0.0.40
codegen_flags: <defaults>
</compile_context>

<pallas_src>
import functools
import math

import jax
import jax.numpy as jnp
from jax.experimental import pallas as pl
from jax.experimental.pallas import tpu as pltpu

_BN_EPS = 1e-5
_MAX_TK = 1152                      # K-tile upper bound (multiple of 128)
_VMEM_LIMIT = 32 * 1024 * 1024      # explicit scoped-VMEM budget (fits v5e/v6e/v7x)


def _round_up(x, m):
    return (x + m - 1) // m * m


def _pick_tm(M):
    """Row-tile: fill the MXU (256-wide on v6e/v7x, 128 on v5e)."""
    if M < 256:
        return _round_up(M, 8)
    try:
        kind = jax.devices()[0].device_kind.lower()
    except Exception:
        kind = ""
    if "v5 lite" in kind or "v5e" in kind:
        return 128
    return 256


# --------------------------------------------------------------------------
# Pallas kernels
# --------------------------------------------------------------------------

def _conv_mm_kernel(p_ref, w_ref, b_ref, o_ref, acc_ref, *, relu):
    """(TM, TK)bf16 @ (TK, Op)bf16 -> f32 acc; bias (+ ReLU) on the last K step."""
    k = pl.program_id(1)

    @pl.when(k == 0)
    def _():
        acc_ref[...] = jnp.zeros_like(acc_ref)

    acc_ref[...] += jnp.dot(p_ref[...], w_ref[...],
                            preferred_element_type=jnp.float32)

    @pl.when(k == pl.num_programs(1) - 1)
    def _():
        out = acc_ref[...] + b_ref[...]
        if relu:
            out = jnp.maximum(out, 0.0)
        o_ref[...] = out


def _conv_mm_res_kernel(p_ref, w_ref, b_ref, r_ref, o_ref, acc_ref, *, relu):
    """Same, but fuses the residual add (BasicBlock skip) in the finalize step."""
    k = pl.program_id(1)

    @pl.when(k == 0)
    def _():
        acc_ref[...] = jnp.zeros_like(acc_ref)

    acc_ref[...] += jnp.dot(p_ref[...], w_ref[...],
                            preferred_element_type=jnp.float32)

    @pl.when(k == pl.num_programs(1) - 1)
    def _():
        out = acc_ref[...] + b_ref[...] + r_ref[...]
        if relu:
            out = jnp.maximum(out, 0.0)
        o_ref[...] = out


def _maxpool_kernel(t_ref, o_ref):
    # t_ref: (9, TM, Cp) — running max over the 9 taps (pure VPU, lane-dense store)
    o_ref[...] = jnp.max(t_ref[...], axis=0)


# --------------------------------------------------------------------------
# Glue: im2col patch extraction (strided slices only)
# --------------------------------------------------------------------------

def _im2col(x, kh, kw, stride, padding, dilation):
    """x: (N, H, W, C) -> (N, oh, ow, kh*kw, C)."""
    N, H, W, C = x.shape
    if padding > 0:
        x = jnp.pad(x, ((0, 0), (padding, padding), (padding, padding), (0, 0)))
    Hp = H + 2 * padding
    Wp = W + 2 * padding
    oh = (Hp - dilation * (kh - 1) - 1) // stride + 1
    ow = (Wp - dilation * (kw - 1) - 1) // stride + 1
    cols = []
    for i in range(kh):
        for j in range(kw):
            slab = x[:,
                     i * dilation: i * dilation + (oh - 1) * stride + 1: stride,
                     j * dilation: j * dilation + (ow - 1) * stride + 1: stride,
                     :]
            cols.append(slab)
    patches = jnp.stack(cols, axis=3)  # (N, oh, ow, kh*kw, C)
    return patches, oh, ow


# --------------------------------------------------------------------------
# Parameter init (mirrors the PyTorch __init__ init scheme)
# --------------------------------------------------------------------------

def _conv_init(key, cout, cin, kh, kw):
    n = kh * kw * cout
    return jax.random.normal(key, (cout, cin, kh, kw), jnp.float32) * math.sqrt(2.0 / n)


def _bn_params(c):
    gamma = jnp.ones((c,), jnp.float32)
    beta = jnp.zeros((c,), jnp.float32)
    running_mean = jnp.zeros((c,), jnp.float32)
    running_var = jnp.ones((c,), jnp.float32)
    scale = gamma / jnp.sqrt(running_var + _BN_EPS)
    bias = beta - running_mean * scale
    return scale, bias


# --------------------------------------------------------------------------
# Conv + folded BN (+ residual / ReLU) module calling the Pallas matmul kernel
# --------------------------------------------------------------------------

class ConvBN:
    """PyTorch Conv2d(bias=False) + BatchNorm2d (inference), fused at kernel level."""

    def __init__(self, key, cin, cout, ksize, *, stride=1, padding=0, dilation=1):
        w = _conv_init(key, cout, cin, ksize, ksize)         # (O, Cin, kh, kw)
        scale, bias = _bn_params(cout)

        self.kh = self.kw = ksize
        self.stride, self.padding, self.dilation = stride, padding, dilation
        self.Cin, self.O = cin, cout

        K = ksize * ksize * cin
        Op = _round_up(cout, 128)                            # lane-dense output slab
        Kp_base = _round_up(K, 128)
        nk = max(1, -(-Kp_base // _MAX_TK))                  # number of K steps
        TK = _round_up(-(-Kp_base // nk), 128)               # K tile (multiple of 128)
        Kp = TK * nk
        self.K, self.Kp, self.Op, self.TK, self.nk = K, Kp, Op, TK, nk

        # Fold BN scale into the weight, pre-reshape to (K, O) once, pad, cast to bf16.
        wmat = jnp.transpose(w, (2, 3, 1, 0)).reshape(K, cout) * scale[None, :]
        wmat = jnp.pad(wmat, ((0, Kp - K), (0, Op - cout)))
        self.wmat = wmat.astype(jnp.bfloat16)
        self.bias = jnp.pad(bias, (0, Op - cout)).reshape(1, Op).astype(jnp.float32)

    def __call__(self, x, *, relu=False, residual=None):
        N = x.shape[0]
        patches, oh, ow = _im2col(x, self.kh, self.kw, self.stride,
                                  self.padding, self.dilation)
        M = N * oh * ow
        patches = patches.reshape(M, self.K)

        TM = _pick_tm(M)
        Mp = _round_up(M, TM)
        patches = jnp.pad(patches, ((0, Mp - M), (0, self.Kp - self.K)))
        patches = patches.astype(jnp.bfloat16)               # bf16 MXU operands

        args = [patches, self.wmat, self.bias]
        in_specs = [
            pl.BlockSpec((TM, self.TK), lambda i, k: (i, k)),
            pl.BlockSpec((self.TK, self.Op), lambda i, k: (k, 0)),
            pl.BlockSpec((1, self.Op), lambda i, k: (0, 0)),
        ]
        if residual is not None:
            r = residual.reshape(M, self.O).astype(jnp.float32)
            r = jnp.pad(r, ((0, Mp - M), (0, self.Op - self.O)))
            args.append(r)
            # index map is constant in k -> fetched once per M tile, not per K step
            in_specs.append(pl.BlockSpec((TM, self.Op), lambda i, k: (i, 0)))
            kernel = functools.partial(_conv_mm_res_kernel, relu=relu)
        else:
            kernel = functools.partial(_conv_mm_kernel, relu=relu)

        out = pl.pallas_call(
            kernel,
            out_shape=jax.ShapeDtypeStruct((Mp, self.Op), jnp.float32),
            grid=(Mp // TM, self.nk),
            in_specs=in_specs,
            out_specs=pl.BlockSpec((TM, self.Op), lambda i, k: (i, 0)),
            scratch_shapes=[pltpu.VMEM((TM, self.Op), jnp.float32)],
            compiler_params=pltpu.CompilerParams(
                dimension_semantics=("parallel", "arbitrary"),
                vmem_limit_bytes=_VMEM_LIMIT),
        )(*args)
        return out[:M, :self.O].reshape(N, oh, ow, self.O)


def maxpool2d_3x3_s2_p1(x):
    """nn.MaxPool2d(kernel_size=3, stride=2, padding=1) on NHWC via a 9-tap running max."""
    N, H, W, C = x.shape
    xp = jnp.pad(x, ((0, 0), (1, 1), (1, 1), (0, 0)), constant_values=-jnp.inf)
    Hp, Wp = H + 2, W + 2
    oh = (Hp - 3) // 2 + 1
    ow = (Wp - 3) // 2 + 1
    M = N * oh * ow

    slabs = []
    for i in range(3):
        for j in range(3):
            slab = xp[:, i: i + (oh - 1) * 2 + 1: 2, j: j + (ow - 1) * 2 + 1: 2, :]
            slabs.append(slab.reshape(M, C))
    taps = jnp.stack(slabs, axis=0)                            # (9, M, C)

    Cp = _round_up(C, 128)                                     # lane-dense output
    TM = _pick_tm(M)
    Mp = _round_up(M, TM)
    taps = jnp.pad(taps, ((0, 0), (0, Mp - M), (0, Cp - C)))

    out = pl.pallas_call(
        _maxpool_kernel,
        out_shape=jax.ShapeDtypeStruct((Mp, Cp), jnp.float32),
        grid=(Mp // TM,),
        in_specs=[pl.BlockSpec((9, TM, Cp), lambda i: (0, i, 0))],
        out_specs=pl.BlockSpec((TM, Cp), lambda i: (i, 0)),
        compiler_params=pltpu.CompilerParams(
            dimension_semantics=("parallel",),
            vmem_limit_bytes=_VMEM_LIMIT),
    )(taps)
    return out[:M, :C].reshape(N, oh, ow, C)


# --------------------------------------------------------------------------
# Blocks / model
# --------------------------------------------------------------------------

class Downsample:
    def __init__(self, key, inplanes, outplanes, ksize, stride, padding, dilation):
        self.conv = ConvBN(key, inplanes, outplanes, ksize,
                           stride=stride, padding=padding, dilation=dilation)

    def __call__(self, x):
        return self.conv(x, relu=False)


class BasicBlock:
    expansion = 1

    def __init__(self, key, inplanes, planes, stride=1, downsample=None, dilation=1):
        # padding logic mirrors the pysot-style BasicBlock used by this tracker backbone
        padding = 2 - stride
        if dilation > 1:
            padding = dilation
        dd = dilation
        pad = padding
        if downsample is not None and dilation > 1:
            dd = dilation // 2
            pad = dd
        k1, k2 = jax.random.split(key)
        self.conv1 = ConvBN(k1, inplanes, planes, 3, stride=stride, padding=pad, dilation=dd)
        self.conv2 = ConvBN(k2, planes, planes, 3, stride=1, padding=dilation, dilation=dilation)
        self.downsample = downsample

    def __call__(self, x):
        residual = self.downsample(x) if self.downsample is not None else x
        y = self.conv1(x, relu=True)
        out = self.conv2(y, relu=True, residual=residual)   # relu(bn2(conv2) + skip)
        return out


class ResNet:
    def __init__(self, key, block, layers, used_layers):
        self.inplanes = 64
        keys = jax.random.split(key, 5)
        self.conv1 = ConvBN(keys[0], 3, 64, 7, stride=2, padding=0, dilation=1)
        self.used_layers = used_layers

        self.layer1 = self._make_layer(keys[1], block, 64, layers[0])
        self.layer2 = self._make_layer(keys[2], block, 128, layers[1], stride=2)
        self.feature_size = 128 * block.expansion

        has_layer3 = 3 in used_layers or 4 in used_layers
        has_layer4 = 4 in used_layers
        if has_layer3:
            self.layer3 = self._make_layer(keys[3], block, 256, layers[2],
                                           stride=1, dilation=2)
            self.feature_size = (256 + 128) * block.expansion
        else:
            self.layer3 = lambda x: x
        if has_layer4:
            self.layer4 = self._make_layer(keys[4], block, 512, layers[3],
                                           stride=1, dilation=4)
            self.feature_size = 512 * block.expansion
        else:
            self.layer4 = lambda x: x

    def _make_layer(self, key, block, planes, blocks, stride=1, dilation=1):
        keys = jax.random.split(key, blocks + 1)
        downsample = None
        if stride != 1 or self.inplanes != planes * block.expansion:
            if stride == 1 and dilation == 1:
                downsample = Downsample(keys[0], self.inplanes,
                                        planes * block.expansion, 1, stride, 0, 1)
            else:
                if dilation > 1:
                    dd = dilation // 2
                    padding = dd
                else:
                    dd = 1
                    padding = 0
                downsample = Downsample(keys[0], self.inplanes,
                                        planes * block.expansion, 3, stride,
                                        padding, dd)
        mods = [block(keys[1], self.inplanes, planes, stride, downsample,
                      dilation=dilation)]
        self.inplanes = planes * block.expansion
        for i in range(1, blocks):
            mods.append(block(keys[1 + i], self.inplanes, planes, dilation=dilation))

        def seq(x, _mods=tuple(mods)):
            for m in _mods:
                x = m(x)
            return x
        return seq

    def __call__(self, x_nchw):
        # NCHW (PyTorch) -> NHWC (kernel layout)
        x = jnp.transpose(x_nchw, (0, 2, 3, 1)).astype(jnp.float32)
        x_ = self.conv1(x, relu=True)
        x = maxpool2d_3x3_s2_p1(x_)
        p1 = self.layer1(x)
        p2 = self.layer2(p1)
        p3 = self.layer3(p2)
        p4 = self.layer4(p3)
        outs = [x_, p1, p2, p3, p4]
        # NHWC -> NCHW on the selected outputs (matches PyTorch return layout)
        outs = [jnp.transpose(outs[i], (0, 3, 1, 2)) for i in self.used_layers]
        if len(outs) == 1:
            return outs[0]
        return outs


if __name__ == "__main__":
    key = jax.random.PRNGKey(0)
    kp, kx = jax.random.split(key)

    model = ResNet(kp, BasicBlock, layers=[1, 1, 1, 1], used_layers=[2, 3, 4])
    x = jax.random.normal(kx, (2, 3, 32, 32), jnp.float32)  # NCHW, like PyTorch

    outs = model(x)
    outs = jax.block_until_ready(outs)

    # sanity: p2 (2,128,3,3), p3 (2,256,3,3), p4 (2,512,3,3)
    assert outs[0].shape == (2, 128, 3, 3)
    assert outs[1].shape == (2, 256, 3, 3)
    assert outs[2].shape == (2, 512, 3, 3)
    assert all(bool(jnp.all(jnp.isfinite(o))) for o in outs)
    print("KERNEL_OK")
</pallas_src>

<mosaic_0001>
module attributes {stable_mosaic.version = 11 : i64} {
  func.func @_conv_mm_kernel(%arg0: i32, %arg1: i32, %arg2: memref<256x256xbf16, #tpu.memory_space<vmem>>, %arg3: memref<256x128xbf16, #tpu.memory_space<vmem>>, %arg4: memref<1x128xf32, #tpu.memory_space<vmem>>, %arg5: memref<256x128xf32, #tpu.memory_space<vmem>>, %arg6: memref<256x128xf32, #tpu.memory_space<vmem>>) attributes {dimension_semantics = [#tpu.dimension_semantics<parallel>, #tpu.dimension_semantics<arbitrary>], iteration_bounds = array<i64: 2, 1>, scalar_prefetch = 0 : i64, scratch_operands = 1 : i64, tpu.core_type = #tpu.core_type<tc>, window_params = [{transform_indices = @transform_0, window_bounds = array<i64: 256, 256>}, {transform_indices = @transform_1, window_bounds = array<i64: 256, 128>}, {pipeline_mode = #tpu.pipeline_mode<synchronous>, transform_indices = @transform_2, window_bounds = array<i64: 1, 128>}, {transform_indices = @transform_3, window_bounds = array<i64: 256, 128>}]} {
    %c0_i32 = arith.constant 0 : i32
    %0 = arith.cmpi eq, %arg1, %c0_i32 : i32
    %1 = arith.extui %0 : i1 to i32
    %c0_i32_0 = arith.constant 0 : i32
    %2 = arith.cmpi ne, %1, %c0_i32_0 : i32
    scf.if %2 {
      %cst_10 = arith.constant 0.000000e+00 : f32
      %12 = vector.broadcast %cst_10 : f32 to vector<256x128xf32>
      %c0_11 = arith.constant 0 : index
      %c0_12 = arith.constant 0 : index
      %13 = vector.load %arg6[%c0_11, %c0_12] : memref<256x128xf32, #tpu.memory_space<vmem>>, vector<256x128xf32>
      tpu.vector_store %arg6[%c0_11, %c0_12], %12 {strides = array<i32>} : memref<256x128xf32, #tpu.memory_space<vmem>>, vector<256x128xf32>,
    } else {
    }
    %c0 = arith.constant 0 : index
    %c0_1 = arith.constant 0 : index
    %3 = vector.load %arg6[%c0, %c0_1] : memref<256x128xf32, #tpu.memory_space<vmem>>, vector<256x128xf32>
    %c0_2 = arith.constant 0 : index
    %c0_3 = arith.constant 0 : index
    %4 = vector.load %arg2[%c0_2, %c0_3] : memref<256x256xbf16, #tpu.memory_space<vmem>>, vector<256x256xbf16>
    %c0_4 = arith.constant 0 : index
    %c0_5 = arith.constant 0 : index
    %5 = vector.load %arg3[%c0_4, %c0_5] : memref<256x128xbf16, #tpu.memory_space<vmem>>, vector<256x128xbf16>
    %cst = arith.constant dense<0.000000e+00> : vector<256x128xf32>
    %6 = tpu.matmul %4, %5, %cst {dimension_numbers = #tpu.dot_dimension_numbers<[1], [0], [0], [1], [0, 0, 1, 1], [], []>} : vector<256x256xbf16>, vector<256x128xbf16>, vector<256x128xf32> -> vector<256x128xf32>
    %7 = arith.addf %3, %6 : vector<256x128xf32>
    %c0_6 = arith.constant 0 : index
    %c0_7 = arith.constant 0 : index
    %8 = vector.load %arg6[%c0_6, %c0_7] : memref<256x128xf32, #tpu.memory_space<vmem>>, vector<256x128xf32>
    tpu.vector_store %arg6[%c0_6, %c0_7], %7 {strides = array<i32>} : memref<256x128xf32, #tpu.memory_space<vmem>>, vector<256x128xf32>,
    %c0_i32_8 = arith.constant 0 : i32
    %9 = arith.cmpi eq, %arg1, %c0_i32_8 : i32
    %10 = arith.extui %9 : i1 to i32
    %c0_i32_9 = arith.constant 0 : i32
    %11 = arith.cmpi ne, %10, %c0_i32_9 : i32
    scf.if %11 {
      %c0_10 = arith.constant 0 : index
      %c0_11 = arith.constant 0 : index
      %12 = vector.load %arg6[%c0_10, %c0_11] : memref<256x128xf32, #tpu.memory_space<vmem>>, vector<256x128xf32>
      %c0_12 = arith.constant 0 : index
      %c0_13 = arith.constant 0 : index
      %13 = vector.load %arg4[%c0_12, %c0_13] : memref<1x128xf32, #tpu.memory_space<vmem>>, vector<1x128xf32>
      %14 = vector.broadcast %13 : vector<1x128xf32> to vector<256x128xf32>
      %15 = arith.addf %12, %14 : vector<256x128xf32>
      %cst_14 = arith.constant 0.000000e+00 : f32
      %16 = vector.broadcast %cst_14 : f32 to vector<256x128xf32>
      %17 = arith.maximumf %15, %16 : vector<256x128xf32>
      %c0_15 = arith.constant 0 : index
      %c0_16 = arith.constant 0 : index
      %18 = vector.load %arg5[%c0_15, %c0_16] : memref<256x128xf32, #tpu.memory_space<vmem>>, vector<256x128xf32>
      tpu.vector_store %arg5[%c0_15, %c0_16], %17 {strides = array<i32>} : memref<256x128xf32, #tpu.memory_space<vmem>>, vector<256x128xf32>,
    } else {
    }
    return
  }
  func.func @transform_0(%arg0: i32, %arg1: i32) -> (i32, i32) {
    %c0_i32 = arith.constant 0 : i32
    return %arg0, %arg1 : i32, i32
  }
  func.func @transform_1(%arg0: i32, %arg1: i32) -> (i32, i32) {
    %c0_i32 = arith.constant 0 : i32
    %c0_i32_0 = arith.constant 0 : i32
    return %arg1, %c0_i32 : i32, i32
  }
  func.func @transform_2(%arg0: i32, %arg1: i32) -> (i32, i32) {
    %c0_i32 = arith.constant 0 : i32
    %c0_i32_0 = arith.constant 0 : i32
    %c0_i32_1 = arith.constant 0 : i32
    return %c0_i32, %c0_i32_0 : i32, i32
  }
  func.func @transform_3(%arg0: i32, %arg1: i32) -> (i32, i32) {
    %c0_i32 = arith.constant 0 : i32
    %c0_i32_0 = arith.constant 0 : i32
    return %arg0, %c0_i32 : i32, i32
  }
}

</mosaic_0001>

<llo_original>
// kernel: tpu_custom_call.1
$region0: #{tpu_custom_call.1}
  #allocation0 [shape = 'u32[]', space=smem, size = 0x4, offset = 0x4, fixed_abs, tag = 'smem constant byte address 0x4 - core index']
  #allocation1 [shape = 'u32[72,128]{1,0:T(1,128)}', space=vmem, size = 0x9000, scoped, tag = 'internal scratch']
  #allocation2 [shape = 'f32[256,128]{1,0:T(8,128)}', space=vmem, size = 0x20000, scoped, tag = 'scratch operand']
  %s0 = inlined_call_operand.hbm [shape: bf16[512,256], index: 0, kind: input, shape index: {}]
  %s1 = inlined_call_operand.hbm [shape: bf16[256,128], index: 1, kind: input, shape index: {}]
  %s2 = inlined_call_operand.vmem [shape: f32[1,128], index: 2, kind: input, shape index: {}]
  %s3 = inlined_call_operand.hbm [shape: f32[512,128], index: 3, kind: output, shape index: {}]
  %s4 = sld [smem:[#allocation0]]
  $region61: #{tpu_custom_call.1} parent=0
    _
  %s6 = ssub.s32 1, %s4
  %s7 = scalar_select 0, %s6, %s4
  $region1: #{tpu_custom_call.1} parent=0
    #allocation3 [shape = 'u8[262144]{0}', space=vmem, size = 0x40000, scoped, tag = 'input window, operand 0']
    #allocation4 [shape = 's32[2]{0}', space=sflag, size = 0x8, scoped, tag = 'scoped memory for tpu_custom_call.1']
    #allocation5 [shape = 's32[2]{0}', space=sflag, size = 0x8, scoped, tag = 'scoped memory for tpu_custom_call.1']
    #allocation6 [shape = 'u8[65536]{0}', space=vmem, size = 0x10000, scoped, tag = 'input window, operand 1, single buffered']
    #allocation7 [shape = 's32[1]{0}', space=sflag, size = 0x4, scoped, tag = 'scoped memory for tpu_custom_call.1']
    #allocation8 [shape = 'u8[262144]{0}', space=vmem, size = 0x40000, scoped, tag = 'output window, operand 0']
    %8 = vsyncpa [#allocation4], 0
    %s9 = scalar_lea.sflag [#allocation4], 1
    %10 = vsyncpa %s9, 0
    %11 = vsyncpa [#allocation7], 0
    %12 = vsyncpa [#allocation5], 0
    %s13 = scalar_lea.sflag [#allocation5], 1
    %14 = vsyncpa %s13, 0
    loop: start=0, step=1, limit=4
    $region2: #{tpu_custom_call.1} parent=1 // loop_pre_header
      _
    $region3: #{tpu_custom_call.1} parent=1 // loop_header
      %s16 = sphi 0, %s20
      %p17 = scmp.ge.s32.totalorder %s16, 4
      %s23 = sphi 0, %s35
      %s24 = sphi 0, %s31
      %s25 = sphi 0, %s23
      %s26 = sphi 0, %s24
      %s27 = sphi 0, %s25
      %s28 = sphi 0, %s26
      %s40 = sphi 0, %s42
      %s43 = sphi 0, %s40
      %s44 = sphi 0, %s43
      %s60 = sphi 0, %s44
      %s66 = sphi 0, %s68
      %s69 = sphi 0, %s66
      %s70 = sphi 0, %s69
      %s86 = sphi 0, %s70
      %s90 = sphi 0, %s90
      %s92 = sphi 0, %s90
      %s93 = sphi 0, %s92
      %s107 = sphi 0, %s93
      %s113 = sphi 0, %s115
      %s116 = sphi 0, %s113
      %s117 = sphi 0, %s116
      %s133 = sphi 0, %s117
    $region4: #{tpu_custom_call.1} parent=1 // loop_header_branch
      %19 = sbr.rel (%p17) target = $region8
    $region5: #{tpu_custom_call.1} parent=1 // loop_body
      %s21 = ssub.s32 %s16, 1
      %s22 = ssub.s32 %s16, 2
      %s29 = sadd.s32 1, %s24
      %p30 = scmp.ge.s32.totalorder %s29, 1
      %s31 = scalar_select %p30, 0, %s29
      %s32 = sadd.s32 1, %s23
      %s33 = scalar_select %p30, %s32, %s23
      %p34 = scmp.ge.s32.totalorder %s33, 2
      %s35 = scalar_select %p34, 0, %s33
      %s36 = ssub.s32 %s23, %s35
      %s37 = ssub.s32 %s24, %s31
      %s38 = sor.u32 %s36, %s37
      %p39 = scmp.eq.s32.totalorder %s38, 0
      %s41 = sadd.s32 %s40, 1
      %s42 = scalar_select %p39, %s40, %s41
      %p45 = pneg %p39
      %p46 = scmp.eq.s32.totalorder %s16, 1
      %p47 = por %p45, %p46
      %p48 = scmp.ne.s32.totalorder %s40, %s43
      %p49 = scmp.eq.s32.totalorder %s16, 0
      %p50 = por %p48, %p49
      %p51 = scmp.ne.s32.totalorder %s40, %s43
      %p52 = scmp.eq.s32.totalorder %s21, 1
      %p53 = por %p51, %p52
      %p54 = scmp.ne.s32.totalorder %s43, %s44
      %p55 = scmp.eq.s32.totalorder %s21, 0
      %p56 = por %p54, %p55
      %p57 = scmp.ne.s32.totalorder %s43, %s44
      %p58 = scmp.eq.s32.totalorder %s22, 1
      %p59 = por %p57, %p58
      %p61 = scmp.ne.s32.totalorder %s44, %s60
      %p62 = scmp.eq.s32.totalorder %s22, 0
      %p63 = por %p61, %p62
      %s64 = ssub.s32 %s24, %s31
      %p65 = scmp.eq.s32.totalorder %s64, 0
      %s67 = sadd.s32 %s66, 1
      %s68 = scalar_select %p65, %s66, %s67
      %p71 = pneg %p65
      %p72 = scmp.eq.s32.totalorder %s16, 1
      %p73 = por %p71, %p72
      %p74 = scmp.ne.s32.totalorder %s66, %s69
      %p75 = scmp.eq.s32.totalorder %s16, 0
      %p76 = por %p74, %p75
      %p77 = scmp.ne.s32.totalorder %s66, %s69
      %p78 = scmp.eq.s32.totalorder %s21, 1
      %p79 = por %p77, %p78
      %p80 = scmp.ne.s32.totalorder %s69, %s70
      %p81 = scmp.eq.s32.totalorder %s21, 0
      %p82 = por %p80, %p81
      %p83 = scmp.ne.s32.totalorder %s69, %s70
      %p84 = scmp.eq.s32.totalorder %s22, 1
      %p85 = por %p83, %p84
      %p87 = scmp.ne.s32.totalorder %s70, %s86
      %p88 = scmp.eq.s32.totalorder %s22, 0
      %p89 = por %p87, %p88
      %s91 = sadd.s32 %s90, 1
      %p94 = scmp.eq.s32.totalorder %s16, 1
      %p95 = scmp.ne.s32.totalorder %s90, %s92
      %p96 = scmp.eq.s32.totalorder %s16, 0
      %p97 = por %p95, %p96
      %p98 = scmp.ne.s32.totalorder %s90, %s92
      %p99 = scmp.eq.s32.totalorder %s21, 1
      %p100 = por %p98, %p99
      %p101 = scmp.ne.s32.totalorder %s92, %s93
      %p102 = scmp.eq.s32.totalorder %s21, 0
      %p103 = por %p101, %p102
      %p104 = scmp.ne.s32.totalorder %s92, %s93
      %p105 = scmp.eq.s32.totalorder %s22, 1
      %p106 = por %p104, %p105
      %p108 = scmp.ne.s32.totalorder %s93, %s107
      %p109 = scmp.eq.s32.totalorder %s22, 0
      %p110 = por %p108, %p109
      %s111 = ssub.s32 %s23, %s35
      %p112 = scmp.eq.s32.totalorder %s111, 0
      %s114 = sadd.s32 %s113, 1
      %s115 = scalar_select %p112, %s113, %s114
      %p118 = pneg %p112
      %p119 = scmp.eq.s32.totalorder %s16, 1
      %p120 = por %p118, %p119
      %p121 = scmp.ne.s32.totalorder %s113, %s116
      %p122 = scmp.eq.s32.totalorder %s16, 0
      %p123 = por %p121, %p122
      %p124 = scmp.ne.s32.totalorder %s113, %s116
      %p125 = scmp.eq.s32.totalorder %s21, 1
      %p126 = por %p124, %p125
      %p127 = scmp.ne.s32.totalorder %s116, %s117
      %p128 = scmp.eq.s32.totalorder %s21, 0
      %p129 = por %p127, %p128
      %p130 = scmp.ne.s32.totalorder %s116, %s117
      %p131 = scmp.eq.s32.totalorder %s22, 1
      %p132 = por %p130, %p131
      %p134 = scmp.ne.s32.totalorder %s117, %s133
      %p135 = scmp.eq.s32.totalorder %s22, 0
      %p136 = por %p134, %p135
      %p137 = scmp.le.s32.totalorder 1, %s16
      %p138 = scmp.lt.s32.totalorder %s16, 3
      %p139 = pnand %p137, %p138
      %p140 = pneg %p139
      // Predicated region
      $region9: #{tpu_custom_call.1} parent=5 // pred_check
        _
      $region10: #{tpu_custom_call.1} parent=5 // pred_check_branch
        %142 = sbr.rel (%p139) target = $region12
      $region11: #{tpu_custom_call.1} parent=5 // pred_region
        %s143 = ssub.s32 %s16, 1
        // Predicated region
        $region13: #{tpu_custom_call.1} parent=11 // pred_check
          %p144 = pneg %p82
        $region14: #{tpu_custom_call.1} parent=11 // pred_check_branch
          %146 = sbr.rel (%p144) target = $region16
        $region15: #{tpu_custom_call.1} parent=11 // pred_region
          %s147 = smul.u32 32, %s26
          %149 = vsyncadd [#allocation7], 0
          %s150 = smul.addr %s147, 4
          %s151 = scalar_lea.hbm %s1, %s150
          %s152 = sshll.u32 %s151, 4
          %s153 = int_to_ptr.hbm [resolvable:$true] %s152
          %s154 = sshll.u32 [#allocation6], 4
          %s155 = int_to_ptr.vmem [resolvable:$true] %s154
          %160 = dma.hbm_to_vmem [thread:$0]  %s153, 2048, %s155, [#allocation7], 64, 64, 4
        $region16: #{tpu_custom_call.1} parent=11 // pred_fallthru
          _
        // Predicated region
        $region17: #{tpu_custom_call.1} parent=11 // pred_check
          %p161 = pneg %p103
        $region18: #{tpu_custom_call.1} parent=11 // pred_check_branch
          %163 = sbr.rel (%p161) target = $region20
        $region19: #{tpu_custom_call.1} parent=11 // pred_region
          _
        $region20: #{tpu_custom_call.1} parent=11 // pred_fallthru
          _
      $region12: #{tpu_custom_call.1} parent=5 // pred_fallthru
        _
      %p164 = scmp.lt.s32.totalorder %s16, 2
      // Predicated region
      $region21: #{tpu_custom_call.1} parent=5 // pred_check
        %p165 = pneg %p164
      $region22: #{tpu_custom_call.1} parent=5 // pred_check_branch
        %167 = sbr.rel (%p165) target = $region24
      $region23: #{tpu_custom_call.1} parent=5 // pred_region
        // Predicated region
        $region25: #{tpu_custom_call.1} parent=23 // pred_check
          %p168 = pneg %p50
        $region26: #{tpu_custom_call.1} parent=23 // pred_check_branch
          %170 = sbr.rel (%p168) target = $region28
        $region27: #{tpu_custom_call.1} parent=23 // pred_region
          %s171 = sand.u32 %s40, 1
          %s172 = scalar_lea.sflag [#allocation4], %s171
          %s173 = sand.u32 %s40, 1
          %s174 = smul.addr %s173, 256
          %s175 = scalar_lea.vmem [#allocation3], %s174
          %s176 = smul.u32 32, %s23
          %s177 = smul.u32 2, %s24
          %179 = vsyncadd %s172, 0
          %s180 = smul.addr %s176, 2
          %s181 = sadd.s32 %s177, %s180
          %s182 = smul.addr %s181, 4
          %s183 = scalar_lea.hbm %s0, %s182
          %s184 = sshll.u32 %s183, 4
          %s185 = int_to_ptr.hbm [resolvable:$true] %s184
          %s186 = sshll.u32 %s175, 4
          %s187 = int_to_ptr.vmem [resolvable:$true] %s186
          %192 = dma.hbm_to_vmem [thread:$0]  %s185, 4096, %s187, %s172, 128, 128, 8
        $region28: #{tpu_custom_call.1} parent=23 // pred_fallthru
          _
      $region24: #{tpu_custom_call.1} parent=5 // pred_fallthru
        _
      %p193 = scmp.le.s32.totalorder 1, %s16
      %p194 = scmp.lt.s32.totalorder %s16, 3
      %p195 = pnand %p193, %p194
      %p196 = pneg %p195
      // Predicated region
      $region29: #{tpu_custom_call.1} parent=5 // pred_check
        _
      $region30: #{tpu_custom_call.1} parent=5 // pred_check_branch
        %198 = sbr.rel (%p195) target = $region32
      $region31: #{tpu_custom_call.1} parent=5 // pred_region
        %s199 = ssub.s32 %s16, 1
        %s200 = sand.u32 %s43, 1
        %s201 = scalar_lea.sflag [#allocation4], %s200
        %s202 = sand.u32 %s43, 1
        %s203 = smul.addr %s202, 256
        %s204 = scalar_lea.vmem [#allocation3], %s203
        // Predicated region
        $region33: #{tpu_custom_call.1} parent=31 // pred_check
          %p205 = pneg %p56
        $region34: #{tpu_custom_call.1} parent=31 // pred_check_branch
          %207 = sbr.rel (%p205) target = $region36
        $region35: #{tpu_custom_call.1} parent=31 // pred_region
          %209 = dma.done %s201, 4096
        $region36: #{tpu_custom_call.1} parent=31 // pred_fallthru
          _
        // Predicated region
        $region37: #{tpu_custom_call.1} parent=31 // pred_check
          %p210 = pneg %p82
        $region38: #{tpu_custom_call.1} parent=31 // pred_check_branch
          %212 = sbr.rel (%p210) target = $region40
        $region39: #{tpu_custom_call.1} parent=31 // pred_region
          %214 = dma.done [#allocation7], 2048
        $region40: #{tpu_custom_call.1} parent=31 // pred_fallthru
          _
        %s215 = sand.u32 %s43, 1
        %s216 = scalar_lea.sflag [#allocation4], %s215
        %s217 = sand.u32 %s43, 1
        %s218 = smul.addr %s217, 256
        %s219 = scalar_lea.vmem [#allocation3], %s218
        %p220 = pneg %p56
        %p221 = pneg %p53
        %p222 = pneg %p82
        %p223 = pneg %p79
        %p224 = pneg %p103
        %p225 = pneg %p100
        %p226 = pneg %p129
        %p227 = pneg %p126
        %s228 = sand.u32 %s116, 1
        %s229 = scalar_lea.sflag [#allocation5], %s228
        %s230 = sand.u32 %s116, 1
        %s231 = smul.addr %s230, 256
        %s232 = scalar_lea.vmem [#allocation8], %s231
        %s233 = smul.u32 32, %s25
        %s234 = smul.u32 2, %s26
        %s235 = smul.u32 32, %s26
        %s236 = smul.u32 32, %s25
        %p237 = scmp.eq.s32.totalorder %s26, 0
        // Predicated region
        $region41: #{tpu_custom_call.1} parent=31 // pred_check
          %p238 = pneg %p237
        $region42: #{tpu_custom_call.1} parent=31 // pred_check_branch
          %240 = sbr.rel (%p238) target = $region44
        $region43: #{tpu_custom_call.1} parent=31 // pred_region
          %241 = vst [vmem:[#allocation2] sm:$0xff] 0.0
          %242 = vst [vmem:[#allocation2 + $0x8] sm:$0xff] 0.0
          %243 = vst [vmem:[#allocation2 + $0x10] sm:$0xff] 0.0
          %244 = vst [vmem:[#allocation2 + $0x18] sm:$0xff] 0.0
          %245 = vst [vmem:[#allocation2 + $0x20] sm:$0xff] 0.0
          %246 = vst [vmem:[#allocation2 + $0x28] sm:$0xff] 0.0
          %247 = vst [vmem:[#allocation2 + $0x30] sm:$0xff] 0.0
          %248 = vst [vmem:[#allocation2 + $0x38] sm:$0xff] 0.0
          %249 = vst [vmem:[#allocation2 + $0x40] sm:$0xff] 0.0
          %250 = vst [vmem:[#allocation2 + $0x48] sm:$0xff] 0.0
          %251 = vst [vmem:[#allocation2 + $0x50] sm:$0xff] 0.0
          %252 = vst [vmem:[#allocation2 + $0x58] sm:$0xff] 0.0
          %253 = vst [vmem:[#allocation2 + $0x60] sm:$0xff] 0.0
          %254 = vst [vmem:[#allocation2 + $0x68] sm:$0xff] 0.0
          %255 = vst [vmem:[#allocation2 + $0x70] sm:$0xff] 0.0
          %256 = vst [vmem:[#allocation2 + $0x78] sm:$0xff] 0.0
          %257 = vst [vmem:[#allocation2 + $0x80] sm:$0xff] 0.0
          %258 = vst [vmem:[#allocation2 + $0x88] sm:$0xff] 0.0
          %259 = vst [vmem:[#allocation2 + $0x90] sm:$0xff] 0.0
          %260 = vst [vmem:[#allocation2 + $0x98] sm:$0xff] 0.0
          %261 = vst [vmem:[#allocation2 + $0xa0] sm:$0xff] 0.0
          %262 = vst [vmem:[#allocation2 + $0xa8] sm:$0xff] 0.0
          %263 = vst [vmem:[#allocation2 + $0xb0] sm:$0xff] 0.0
          %264 = vst [vmem:[#allocation2 + $0xb8] sm:$0xff] 0.0
          %265 = vst [vmem:[#allocation2 + $0xc0] sm:$0xff] 0.0
          %266 = vst [vmem:[#allocation2 + $0xc8] sm:$0xff] 0.0
          %267 = vst [vmem:[#allocation2 + $0xd0] sm:$0xff] 0.0
          %268 = vst [vmem:[#allocation2 + $0xd8] sm:$0xff] 0.0
          %269 = vst [vmem:[#allocation2 + $0xe0] sm:$0xff] 0.0
          %270 = vst [vmem:[#allocation2 + $0xe8] sm:$0xff] 0.0
          %271 = vst [vmem:[#allocation2 + $0xf0] sm:$0xff] 0.0
          %272 = vst [vmem:[#allocation2 + $0xf8] sm:$0xff] 0.0
        $region44: #{tpu_custom_call.1} parent=31 // pred_fallthru
          _
        %v273 = vld [vmem:[#allocation2] sm:$0xff]
        %v274 = vld [vmem:[#allocation2 + $0x8] sm:$0xff]
        %v275 = vld [vmem:[#allocation2 + $0x10] sm:$0xff]
        %v276 = vld [vmem:[#allocation2 + $0x18] sm:$0xff]
        %v277 = vld [vmem:[#allocation2 + $0x20] sm:$0xff]
        %v278 = vld [vmem:[#allocation2 + $0x28] sm:$0xff]
        %v279 = vld [vmem:[#allocation2 + $0x30] sm:$0xff]
        %v280 = vld [vmem:[#allocation2 + $0x38] sm:$0xff]
        %v281 = vld [vmem:[#allocation2 + $0x40] sm:$0xff]
        %v282 = vld [vmem:[#allocation2 + $0x48] sm:$0xff]
        %v283 = vld [vmem:[#allocation2 + $0x50] sm:$0xff]
        %v284 = vld [vmem:[#allocation2 + $0x58] sm:$0xff]
        %v285 = vld [vmem:[#allocation2 + $0x60] sm:$0xff]
        %v286 = vld [vmem:[#allocation2 + $0x68] sm:$0xff]
        %v287 = vld [vmem:[#allocation2 + $0x70] sm:$0xff]
        %v288 = vld [vmem:[#allocation2 + $0x78] sm:$0xff]
        %v289 = vld [vmem:[#allocation2 + $0x80] sm:$0xff]
        %v290 = vld [vmem:[#allocation2 + $0x88] sm:$0xff]
        %v291 = vld [vmem:[#allocation2 + $0x90] sm:$0xff]
        %v292 = vld [vmem:[#allocation2 + $0x98] sm:$0xff]
        %v293 = vld [vmem:[#allocation2 + $0xa0] sm:$0xff]
        %v294 = vld [vmem:[#allocation2 + $0xa8] sm:$0xff]
        %v295 = vld [vmem:[#allocation2 + $0xb0] sm:$0xff]
        %v296 = vld [vmem:[#allocation2 + $0xb8] sm:$0xff]
        %v297 = vld [vmem:[#allocation2 + $0xc0] sm:$0xff]
        %v298 = vld [vmem:[#allocation2 + $0xc8] sm:$0xff]
        %v299 = vld [vmem:[#allocation2 + $0xd0] sm:$0xff]
        %v300 = vld [vmem:[#allocation2 + $0xd8] sm:$0xff]
        %v301 = vld [vmem:[#allocation2 + $0xe0] sm:$0xff]
        %v302 = vld [vmem:[#allocation2 + $0xe8] sm:$0xff]
        %v303 = vld [vmem:[#allocation2 + $0xf0] sm:$0xff]
        %v304 = vld [vmem:[#allocation2 + $0xf8] sm:$0xff]
        %v305 = vld [vmem:[%s204] sm:$0xff]
        %v306 = vld [vmem:[%s204 + $0x8] sm:$0xff]
        %v307 = vld [vmem:[%s204 + $0x10] sm:$0xff]
        %v308 = vld [vmem:[%s204 + $0x18] sm:$0xff]
        %v309 = vld [vmem:[%s204 + $0x20] sm:$0xff]
        %v310 = vld [vmem:[%s204 + $0x28] sm:$0xff]
        %v311 = vld [vmem:[%s204 + $0x30] sm:$0xff]
        %v312 = vld [vmem:[%s204 + $0x38] sm:$0xff]
        %v313 = vld [vmem:[%s204 + $0x40] sm:$0xff]
        %v314 = vld [vmem:[%s204 + $0x48] sm:$0xff]
        %v315 = vld [vmem:[%s204 + $0x50] sm:$0xff]
        %v316 = vld [vmem:[%s204 + $0x58] sm:$0xff]
        %v317 = vld [vmem:[%s204 + $0x60] sm:$0xff]
        %v318 = vld [vmem:[%s204 + $0x68] sm:$0xff]
        %v319 = vld [vmem:[%s204 + $0x70] sm:$0xff]
        %v320 = vld [vmem:[%s204 + $0x78] sm:$0xff]
        %v321 = vld [vmem:[%s204 + $0x80] sm:$0xff]
        %v322 = vld [vmem:[%s204 + $0x88] sm:$0xff]
        %v323 = vld [vmem:[%s204 + $0x90] sm:$0xff]
        %v324 = vld [vmem:[%s204 + $0x98] sm:$0xff]
        %v325 = vld [vmem:[%s204 + $0xa0] sm:$0xff]
        %v326 = vld [vmem:[%s204 + $0xa8] sm:$0xff]
        %v327 = vld [vmem:[%s204 + $0xb0] sm:$0xff]
        %v328 = vld [vmem:[%s204 + $0xb8] sm:$0xff]
        %v329 = vld [vmem:[%s204 + $0xc0] sm:$0xff]
        %v330 = vld [vmem:[%s204 + $0xc8] sm:$0xff]
        %v331 = vld [vmem:[%s204 + $0xd0] sm:$0xff]
        %v332 = vld [vmem:[%s204 + $0xd8] sm:$0xff]
        %v333 = vld [vmem:[%s204 + $0xe0] sm:$0xff]
        %v334 = vld [vmem:[%s204 + $0xe8] sm:$0xff]
        %v335 = vld [vmem:[%s204 + $0xf0] sm:$0xff]
        %v336 = vld [vmem:[%s204 + $0xf8] sm:$0xff]
        %v337 = vld [vmem:[#allocation6] sm:$0xf]
        %v338 = vld [vmem:[#allocation6 + $0x4] sm:$0xf]
        %v339 = vld [vmem:[#allocation6 + $0x8] sm:$0xf]
        %v340 = vld [vmem:[#allocation6 + $0xc] sm:$0xf]
        %v341 = vld [vmem:[#allocation6 + $0x10] sm:$0xf]
        %v342 = vld [vmem:[#allocation6 + $0x14] sm:$0xf]
        %v343 = vld [vmem:[#allocation6 + $0x18] sm:$0xf]
        %v344 = vld [vmem:[#allocation6 + $0x1c] sm:$0xf]
        %v345 = vld [vmem:[#allocation6 + $0x20] sm:$0xf]
        %v346 = vld [vmem:[#allocation6 + $0x24] sm:$0xf]
        %v347 = vld [vmem:[#allocation6 + $0x28] sm:$0xf]
        %v348 = vld [vmem:[#allocation6 + $0x2c] sm:$0xf]
        %v349 = vld [vmem:[#allocation6 + $0x30] sm:$0xf]
        %v350 = vld [vmem:[#allocation6 + $0x34] sm:$0xf]
        %v351 = vld [vmem:[#allocation6 + $0x38] sm:$0xf]
        %v352 = vld [vmem:[#allocation6 + $0x3c] sm:$0xf]
        %v353 = vld [vmem:[#allocation6 + $0x40] sm:$0xf]
        %v354 = vld [vmem:[#allocation6 + $0x44] sm:$0xf]
        %v355 = vld [vmem:[#allocation6 + $0x48] sm:$0xf]
        %v356 = vld [vmem:[#allocation6 + $0x4c] sm:$0xf]
        %v357 = vld [vmem:[#allocation6 + $0x50] sm:$0xf]
        %v358 = vld [vmem:[#allocation6 + $0x54] sm:$0xf]
        %v359 = vld [vmem:[#allocation6 + $0x58] sm:$0xf]
        %v360 = vld [vmem:[#allocation6 + $0x5c] sm:$0xf]
        %v361 = vld [vmem:[#allocation6 + $0x60] sm:$0xf]
        %v362 = vld [vmem:[#allocation6 + $0x64] sm:$0xf]
        %v363 = vld [vmem:[#allocation6 + $0x68] sm:$0xf]
        %v364 = vld [vmem:[#allocation6 + $0x6c] sm:$0xf]
        %v365 = vld [vmem:[#allocation6 + $0x70] sm:$0xf]
        %v366 = vld [vmem:[#allocation6 + $0x74] sm:$0xf]
        %v367 = vld [vmem:[#allocation6 + $0x78] sm:$0xf]
        %v368 = vld [vmem:[#allocation6 + $0x7c] sm:$0xf]
        %v401 = vunpack.c.l.b16 %v305
        %v402 = vunpack.c.h.b16 %v305
        %v403 = vunpack.c.l.b16 %v306
        %v404 = vunpack.c.h.b16 %v306
        %v405 = vunpack.c.l.b16 %v307
        %v406 = vunpack.c.h.b16 %v307
        %v407 = vunpack.c.l.b16 %v308
        %v408 = vunpack.c.h.b16 %v308
        %v409 = vunpack.c.l.b16 %v309
        %v410 = vunpack.c.h.b16 %v309
        %v411 = vunpack.c.l.b16 %v310
        %v412 = vunpack.c.h.b16 %v310
        %v413 = vunpack.c.l.b16 %v311
        %v414 = vunpack.c.h.b16 %v311
        %v415 = vunpack.c.l.b16 %v312
        %v416 = vunpack.c.h.b16 %v312
        %v417 = vunpack.c.l.b16 %v313
        %v418 = vunpack.c.h.b16 %v313
        %v419 = vunpack.c.l.b16 %v314
        %v420 = vunpack.c.h.b16 %v314
        %v421 = vunpack.c.l.b16 %v315
        %v422 = vunpack.c.h.b16 %v315
        %v423 = vunpack.c.l.b16 %v316
        %v424 = vunpack.c.h.b16 %v316
        %v425 = vunpack.c.l.b16 %v317
        %v426 = vunpack.c.h.b16 %v317
        %v427 = vunpack.c.l.b16 %v318
        %v428 = vunpack.c.h.b16 %v318
        %v429 = vunpack.c.l.b16 %v319
        %v430 = vunpack.c.h.b16 %v319
        %v431 = vunpack.c.l.b16 %v320
        %v432 = vunpack.c.h.b16 %v320
        %v433 = vunpack.c.l.b16 %v321
        %v434 = vunpack.c.h.b16 %v321
        %v435 = vunpack.c.l.b16 %v322
        %v436 = vunpack.c.h.b16 %v322
        %v437 = vunpack.c.l.b16 %v323
        %v438 = vunpack.c.h.b16 %v323
        %v439 = vunpack.c.l.b16 %v324
        %v440 = vunpack.c.h.b16 %v324
        %v441 = vunpack.c.l.b16 %v325
        %v442 = vunpack.c.h.b16 %v325
        %v443 = vunpack.c.l.b16 %v326
        %v444 = vunpack.c.h.b16 %v326
        %v445 = vunpack.c.l.b16 %v327
        %v446 = vunpack.c.h.b16 %v327
        %v447 = vunpack.c.l.b16 %v328
        %v448 = vunpack.c.h.b16 %v328
        %v449 = vunpack.c.l.b16 %v329
        %v450 = vunpack.c.h.b16 %v329
        %v451 = vunpack.c.l.b16 %v330
        %v452 = vunpack.c.h.b16 %v330
        %v453 = vunpack.c.l.b16 %v331
        %v454 = vunpack.c.h.b16 %v331
        %v455 = vunpack.c.l.b16 %v332
        %v456 = vunpack.c.h.b16 %v332
        %v457 = vunpack.c.l.b16 %v333
        %v458 = vunpack.c.h.b16 %v333
        %v459 = vunpack.c.l.b16 %v334
        %v460 = vunpack.c.h.b16 %v334
        %v461 = vunpack.c.l.b16 %v335
        %v462 = vunpack.c.h.b16 %v335
        %v463 = vunpack.c.l.b16 %v336
        %v464 = vunpack.c.h.b16 %v336
        %v465 = vpack.c.b16 %v403, %v401
        %v466 = vpack.c.b16 %v404, %v402
        %v467 = vpack.c.b16 %v407, %v405
        %v468 = vpack.c.b16 %v408, %v406
        %v469 = vpack.c.b16 %v411, %v409
        %v470 = vpack.c.b16 %v412, %v410
        %v471 = vpack.c.b16 %v415, %v413
        %v472 = vpack.c.b16 %v416, %v414
        %v473 = vpack.c.b16 %v419, %v417
        %v474 = vpack.c.b16 %v420, %v418
        %v475 = vpack.c.b16 %v423, %v421
        %v476 = vpack.c.b16 %v424, %v422
        %v477 = vpack.c.b16 %v427, %v425
        %v478 = vpack.c.b16 %v428, %v426
        %v479 = vpack.c.b16 %v431, %v429
        %v480 = vpack.c.b16 %v432, %v430
        %v481 = vpack.c.b16 %v435, %v433
        %v482 = vpack.c.b16 %v436, %v434
        %v483 = vpack.c.b16 %v439, %v437
        %v484 = vpack.c.b16 %v440, %v438
        %v485 = vpack.c.b16 %v443, %v441
        %v486 = vpack.c.b16 %v444, %v442
        %v487 = vpack.c.b16 %v447, %v445
        %v488 = vpack.c.b16 %v448, %v446
        %v489 = vpack.c.b16 %v451, %v449
        %v490 = vpack.c.b16 %v452, %v450
        %v491 = vpack.c.b16 %v455, %v453
        %v492 = vpack.c.b16 %v456, %v454
        %v493 = vpack.c.b16 %v459, %v457
        %v494 = vpack.c.b16 %v460, %v458
        %v495 = vpack.c.b16 %v463, %v461
        %v496 = vpack.c.b16 %v464, %v462
        %v561 = vunpack.c.l.b16 %v337
        %v562 = vunpack.c.l.b16 %v338
        %v563 = vunpack.c.l.b16 %v339
        %v564 = vunpack.c.l.b16 %v340
        %v565 = vunpack.c.l.b16 %v341
        %v566 = vunpack.c.l.b16 %v342
        %v567 = vunpack.c.l.b16 %v343
        %v568 = vunpack.c.l.b16 %v344
        %v569 = vunpack.c.l.b16 %v345
        %v570 = vunpack.c.l.b16 %v346
        %v571 = vunpack.c.l.b16 %v347
        %v572 = vunpack.c.l.b16 %v348
        %v573 = vunpack.c.l.b16 %v349
        %v574 = vunpack.c.l.b16 %v350
        %v575 = vunpack.c.l.b16 %v351
        %v576 = vunpack.c.l.b16 %v352
        %v577 = vunpack.c.l.b16 %v353
        %v578 = vunpack.c.l.b16 %v354
        %v579 = vunpack.c.l.b16 %v355
        %v580 = vunpack.c.l.b16 %v356
        %v581 = vunpack.c.l.b16 %v357
        %v582 = vunpack.c.l.b16 %v358
        %v583 = vunpack.c.l.b16 %v359
        %v584 = vunpack.c.l.b16 %v360
        %v585 = vunpack.c.l.b16 %v361
        %v586 = vunpack.c.l.b16 %v362
        %v587 = vunpack.c.l.b16 %v363
        %v588 = vunpack.c.l.b16 %v364
        %v589 = vunpack.c.l.b16 %v365
        %v590 = vunpack.c.l.b16 %v366
        %v591 = vunpack.c.l.b16 %v367
        %v592 = vunpack.c.l.b16 %v368
        %v593 = vpack.c.b16 %v562, %v561
        %v594 = vpack.c.b16 %v564, %v563
        %v595 = vpack.c.b16 %v566, %v565
        %v596 = vpack.c.b16 %v568, %v567
        %v597 = vpack.c.b16 %v570, %v569
        %v598 = vpack.c.b16 %v572, %v571
        %v599 = vpack.c.b16 %v574, %v573
        %v600 = vpack.c.b16 %v576, %v575
        %v601 = vpack.c.b16 %v578, %v577
        %v602 = vpack.c.b16 %v580, %v579
        %v603 = vpack.c.b16 %v582, %v581
        %v604 = vpack.c.b16 %v584, %v583
        %v605 = vpack.c.b16 %v586, %v585
        %v606 = vpack.c.b16 %v588, %v587
        %v607 = vpack.c.b16 %v590, %v589
        %v608 = vpack.c.b16 %v592, %v591
        %625 = vmatpush.bf16.msra.mxu0 %v600
        %626 = vmatpush.bf16.msra.mxu0 %v599
        %627 = vmatpush.bf16.msra.mxu0 %v598
        %628 = vmatpush.bf16.msra.mxu0 %v597
        %629 = vmatpush.bf16.msra.mxu0 %v596
        %630 = vmatpush.bf16.msra.mxu0 %v595
        %631 = vmatpush.bf16.msra.mxu0 %v594
        %632 = vmatpush.bf16.msra.mxu0 %v593
        %633 = vmatmul.bf16.gmra.mxu0 %v465
        %v634 = vpop.f32.mrf.mxu0
        %v635 = vadd.f32 0.0, %v634
        %v636 = vpop.f32.mrf.mxu0
        %v637 = vadd.f32 0.0, %v636
        %638 = vmatmul.bf16.gmra.mxu0 %v467
        %v639 = vpop.f32.mrf.mxu0
        %v640 = vadd.f32 0.0, %v639
        %v641 = vpop.f32.mrf.mxu0
        %v642 = vadd.f32 0.0, %v641
        %643 = vmatmul.bf16.gmra.mxu0 %v469
        %v644 = vpop.f32.mrf.mxu0
        %v645 = vadd.f32 0.0, %v644
        %v646 = vpop.f32.mrf.mxu0
        %v647 = vadd.f32 0.0, %v646
        %648 = vmatmul.bf16.gmra.mxu0 %v471
        %v649 = vpop.f32.mrf.mxu0
        %v650 = vadd.f32 0.0, %v649
        %v651 = vpop.f32.mrf.mxu0
        %v652 = vadd.f32 0.0, %v651
        %653 = vmatmul.bf16.gmra.mxu0 %v473
        %v654 = vpop.f32.mrf.mxu0
        %v655 = vadd.f32 0.0, %v654
        %v656 = vpop.f32.mrf.mxu0
        %v657 = vadd.f32 0.0, %v656
        %658 = vmatmul.bf16.gmra.mxu0 %v475
        %v659 = vpop.f32.mrf.mxu0
        %v660 = vadd.f32 0.0, %v659
        %v661 = vpop.f32.mrf.mxu0
        %v662 = vadd.f32 0.0, %v661
        %663 = vmatmul.bf16.gmra.mxu0 %v477
        %v664 = vpop.f32.mrf.mxu0
        %v665 = vadd.f32 0.0, %v664
        %v666 = vpop.f32.mrf.mxu0
        %v667 = vadd.f32 0.0, %v666
        %668 = vmatmul.bf16.gmra.mxu0 %v479
        %v669 = vpop.f32.mrf.mxu0
        %v670 = vadd.f32 0.0, %v669
        %v671 = vpop.f32.mrf.mxu0
        %v672 = vadd.f32 0.0, %v671
        %673 = vmatmul.bf16.gmra.mxu0 %v481
        %v674 = vpop.f32.mrf.mxu0
        %v675 = vadd.f32 0.0, %v674
        %v676 = vpop.f32.mrf.mxu0
        %v677 = vadd.f32 0.0, %v676
        %678 = vmatmul.bf16.gmra.mxu0 %v483
        %v679 = vpop.f32.mrf.mxu0
        %v680 = vadd.f32 0.0, %v679
        %v681 = vpop.f32.mrf.mxu0
        %v682 = vadd.f32 0.0, %v681
        %683 = vmatmul.bf16.gmra.mxu0 %v485
        %v684 = vpop.f32.mrf.mxu0
        %v685 = vadd.f32 0.0, %v684
        %v686 = vpop.f32.mrf.mxu0
        %v687 = vadd.f32 0.0, %v686
        %688 = vmatmul.bf16.gmra.mxu0 %v487
        %v689 = vpop.f32.mrf.mxu0
        %v690 = vadd.f32 0.0, %v689
        %v691 = vpop.f32.mrf.mxu0
        %v692 = vadd.f32 0.0, %v691
        %693 = vmatmul.bf16.gmra.mxu0 %v489
        %v694 = vpop.f32.mrf.mxu0
        %v695 = vadd.f32 0.0, %v694
        %v696 = vpop.f32.mrf.mxu0
        %v697 = vadd.f32 0.0, %v696
        %698 = vmatmul.bf16.gmra.mxu0 %v491
        %v699 = vpop.f32.mrf.mxu0
        %v700 = vadd.f32 0.0, %v699
        %v701 = vpop.f32.mrf.mxu0
        %v702 = vadd.f32 0.0, %v701
        %703 = vmatmul.bf16.gmra.mxu0 %v493
        %v704 = vpop.f32.mrf.mxu0
        %v705 = vadd.f32 0.0, %v704
        %v706 = vpop.f32.mrf.mxu0
        %v707 = vadd.f32 0.0, %v706
        %708 = vmatmul.bf16.gmra.mxu0 %v495
        %v709 = vpop.f32.mrf.mxu0
        %v710 = vadd.f32 0.0, %v709
        %v711 = vpop.f32.mrf.mxu0
        %v712 = vadd.f32 0.0, %v711
        %713 = vdwg.mxu0
        %714 = vmatpush.bf16.msra.mxu0 %v608
        %715 = vmatpush.bf16.msra.mxu0 %v607
        %716 = vmatpush.bf16.msra.mxu0 %v606
        %717 = vmatpush.bf16.msra.mxu0 %v605
        %718 = vmatpush.bf16.msra.mxu0 %v604
        %719 = vmatpush.bf16.msra.mxu0 %v603
        %720 = vmatpush.bf16.msra.mxu0 %v602
        %721 = vmatpush.bf16.msra.mxu0 %v601
        %722 = vmatmul.bf16.gmra.mxu0 %v466
        %v723 = vpop.f32.mrf.mxu0
        %v724 = vadd.f32 %v635, %v723
        %v725 = vpop.f32.mrf.mxu0
        %v726 = vadd.f32 %v637, %v725
        %727 = vmatmul.bf16.gmra.mxu0 %v468
        %v728 = vpop.f32.mrf.mxu0
        %v729 = vadd.f32 %v640, %v728
        %v730 = vpop.f32.mrf.mxu0
        %v731 = vadd.f32 %v642, %v730
        %732 = vmatmul.bf16.gmra.mxu0 %v470
        %v733 = vpop.f32.mrf.mxu0
        %v734 = vadd.f32 %v645, %v733
        %v735 = vpop.f32.mrf.mxu0
        %v736 = vadd.f32 %v647, %v735
        %737 = vmatmul.bf16.gmra.mxu0 %v472
        %v738 = vpop.f32.mrf.mxu0
        %v739 = vadd.f32 %v650, %v738
        %v740 = vpop.f32.mrf.mxu0
        %v741 = vadd.f32 %v652, %v740
        %742 = vmatmul.bf16.gmra.mxu0 %v474
        %v743 = vpop.f32.mrf.mxu0
        %v744 = vadd.f32 %v655, %v743
        %v745 = vpop.f32.mrf.mxu0
        %v746 = vadd.f32 %v657, %v745
        %747 = vmatmul.bf16.gmra.mxu0 %v476
        %v748 = vpop.f32.mrf.mxu0
        %v749 = vadd.f32 %v660, %v748
        %v750 = vpop.f32.mrf.mxu0
        %v751 = vadd.f32 %v662, %v750
        %752 = vmatmul.bf16.gmra.mxu0 %v478
        %v753 = vpop.f32.mrf.mxu0
        %v754 = vadd.f32 %v665, %v753
        %v755 = vpop.f32.mrf.mxu0
        %v756 = vadd.f32 %v667, %v755
        %757 = vmatmul.bf16.gmra.mxu0 %v480
        %v758 = vpop.f32.mrf.mxu0
        %v759 = vadd.f32 %v670, %v758
        %v760 = vpop.f32.mrf.mxu0
        %v761 = vadd.f32 %v672, %v760
        %762 = vmatmul.bf16.gmra.mxu0 %v482
        %v763 = vpop.f32.mrf.mxu0
        %v764 = vadd.f32 %v675, %v763
        %v765 = vpop.f32.mrf.mxu0
        %v766 = vadd.f32 %v677, %v765
        %767 = vmatmul.bf16.gmra.mxu0 %v484
        %v768 = vpop.f32.mrf.mxu0
        %v769 = vadd.f32 %v680, %v768
        %v770 = vpop.f32.mrf.mxu0
        %v771 = vadd.f32 %v682, %v770
        %772 = vmatmul.bf16.gmra.mxu0 %v486
        %v773 = vpop.f32.mrf.mxu0
        %v774 = vadd.f32 %v685, %v773
        %v775 = vpop.f32.mrf.mxu0
        %v776 = vadd.f32 %v687, %v775
        %777 = vmatmul.bf16.gmra.mxu0 %v488
        %v778 = vpop.f32.mrf.mxu0
        %v779 = vadd.f32 %v690, %v778
        %v780 = vpop.f32.mrf.mxu0
        %v781 = vadd.f32 %v692, %v780
        %782 = vmatmul.bf16.gmra.mxu0 %v490
        %v783 = vpop.f32.mrf.mxu0
        %v784 = vadd.f32 %v695, %v783
        %v785 = vpop.f32.mrf.mxu0
        %v786 = vadd.f32 %v697, %v785
        %787 = vmatmul.bf16.gmra.mxu0 %v492
        %v788 = vpop.f32.mrf.mxu0
        %v789 = vadd.f32 %v700, %v788
        %v790 = vpop.f32.mrf.mxu0
        %v791 = vadd.f32 %v702, %v790
        %792 = vmatmul.bf16.gmra.mxu0 %v494
        %v793 = vpop.f32.mrf.mxu0
        %v794 = vadd.f32 %v705, %v793
        %v795 = vpop.f32.mrf.mxu0
        %v796 = vadd.f32 %v707, %v795
        %797 = vmatmul.bf16.gmra.mxu0 %v496
        %v798 = vpop.f32.mrf.mxu0
        %v799 = vadd.f32 %v710, %v798
        %v800 = vpop.f32.mrf.mxu0
        %v801 = vadd.f32 %v712, %v800
        %802 = vdwg.mxu0
        %v803 = vadd.f32 %v273, %v724
        %v804 = vadd.f32 %v274, %v726
        %v805 = vadd.f32 %v275, %v729
        %v806 = vadd.f32 %v276, %v731
        %v807 = vadd.f32 %v277, %v734
        %v808 = vadd.f32 %v278, %v736
        %v809 = vadd.f32 %v279, %v739
        %v810 = vadd.f32 %v280, %v741
        %v811 = vadd.f32 %v281, %v744
        %v812 = vadd.f32 %v282, %v746
        %v813 = vadd.f32 %v283, %v749
        %v814 = vadd.f32 %v284, %v751
        %v815 = vadd.f32 %v285, %v754
        %v816 = vadd.f32 %v286, %v756
        %v817 = vadd.f32 %v287, %v759
        %v818 = vadd.f32 %v288, %v761
        %v819 = vadd.f32 %v289, %v764
        %v820 = vadd.f32 %v290, %v766
        %v821 = vadd.f32 %v291, %v769
        %v822 = vadd.f32 %v292, %v771
        %v823 = vadd.f32 %v293, %v774
        %v824 = vadd.f32 %v294, %v776
        %v825 = vadd.f32 %v295, %v779
        %v826 = vadd.f32 %v296, %v781
        %v827 = vadd.f32 %v297, %v784
        %v828 = vadd.f32 %v298, %v786
        %v829 = vadd.f32 %v299, %v789
        %v830 = vadd.f32 %v300, %v791
        %v831 = vadd.f32 %v301, %v794
        %v832 = vadd.f32 %v302, %v796
        %v833 = vadd.f32 %v303, %v799
        %v834 = vadd.f32 %v304, %v801
        %835 = vst [vmem:[#allocation2] sm:$0xff] %v803
        %836 = vst [vmem:[#allocation2 + $0x8] sm:$0xff] %v804
        %837 = vst [vmem:[#allocation2 + $0x10] sm:$0xff] %v805
        %838 = vst [vmem:[#allocation2 + $0x18] sm:$0xff] %v806
        %839 = vst [vmem:[#allocation2 + $0x20] sm:$0xff] %v807
        %840 = vst [vmem:[#allocation2 + $0x28] sm:$0xff] %v808
        %841 = vst [vmem:[#allocation2 + $0x30] sm:$0xff] %v809
        %842 = vst [vmem:[#allocation2 + $0x38] sm:$0xff] %v810
        %843 = vst [vmem:[#allocation2 + $0x40] sm:$0xff] %v811
        %844 = vst [vmem:[#allocation2 + $0x48] sm:$0xff] %v812
        %845 = vst [vmem:[#allocation2 + $0x50] sm:$0xff] %v813
        %846 = vst [vmem:[#allocation2 + $0x58] sm:$0xff] %v814
        %847 = vst [vmem:[#allocation2 + $0x60] sm:$0xff] %v815
        %848 = vst [vmem:[#allocation2 + $0x68] sm:$0xff] %v816
        %849 = vst [vmem:[#allocation2 + $0x70] sm:$0xff] %v817
        %850 = vst [vmem:[#allocation2 + $0x78] sm:$0xff] %v818
        %851 = vst [vmem:[#allocation2 + $0x80] sm:$0xff] %v819
        %852 = vst [vmem:[#allocation2 + $0x88] sm:$0xff] %v820
        %853 = vst [vmem:[#allocation2 + $0x90] sm:$0xff] %v821
        %854 = vst [vmem:[#allocation2 + $0x98] sm:$0xff] %v822
        %855 = vst [vmem:[#allocation2 + $0xa0] sm:$0xff] %v823
        %856 = vst [vmem:[#allocation2 + $0xa8] sm:$0xff] %v824
        %857 = vst [vmem:[#allocation2 + $0xb0] sm:$0xff] %v825
        %858 = vst [vmem:[#allocation2 + $0xb8] sm:$0xff] %v826
        %859 = vst [vmem:[#allocation2 + $0xc0] sm:$0xff] %v827
        %860 = vst [vmem:[#allocation2 + $0xc8] sm:$0xff] %v828
        %861 = vst [vmem:[#allocation2 + $0xd0] sm:$0xff] %v829
        %862 = vst [vmem:[#allocation2 + $0xd8] sm:$0xff] %v830
        %863 = vst [vmem:[#allocation2 + $0xe0] sm:$0xff] %v831
        %864 = vst [vmem:[#allocation2 + $0xe8] sm:$0xff] %v832
        %865 = vst [vmem:[#allocation2 + $0xf0] sm:$0xff] %v833
        %866 = vst [vmem:[#allocation2 + $0xf8] sm:$0xff] %v834
        // Predicated region
        $region45: #{tpu_custom_call.1} parent=31 // pred_check
          %p867 = pneg %p237
        $region46: #{tpu_custom_call.1} parent=31 // pred_check_branch
          %869 = sbr.rel (%p867) target = $region48
        $region47: #{tpu_custom_call.1} parent=31 // pred_region
          %v870 = vld [vmem:[#allocation2] sm:$0xff]
          %v871 = vld [vmem:[#allocation2 + $0x8] sm:$0xff]
          %v872 = vld [vmem:[#allocation2 + $0x10] sm:$0xff]
          %v873 = vld [vmem:[#allocation2 + $0x18] sm:$0xff]
          %v874 = vld [vmem:[#allocation2 + $0x20] sm:$0xff]
          %v875 = vld [vmem:[#allocation2 + $0x28] sm:$0xff]
          %v876 = vld [vmem:[#allocation2 + $0x30] sm:$0xff]
          %v877 = vld [vmem:[#allocation2 + $0x38] sm:$0xff]
          %v878 = vld [vmem:[#allocation2 + $0x40] sm:$0xff]
          %v879 = vld [vmem:[#allocation2 + $0x48] sm:$0xff]
          %v880 = vld [vmem:[#allocation2 + $0x50] sm:$0xff]
          %v881 = vld [vmem:[#allocation2 + $0x58] sm:$0xff]
          %v882 = vld [vmem:[#allocation2 + $0x60] sm:$0xff]
          %v883 = vld [vmem:[#allocation2 + $0x68] sm:$0xff]
          %v884 = vld [vmem:[#allocation2 + $0x70] sm:$0xff]
          %v885 = vld [vmem:[#allocation2 + $0x78] sm:$0xff]
          %v886 = vld [vmem:[#allocation2 + $0x80] sm:$0xff]
          %v887 = vld [vmem:[#allocation2 + $0x88] sm:$0xff]
          %v888 = vld [vmem:[#allocation2 + $0x90] sm:$0xff]
          %v889 = vld [vmem:[#allocation2 + $0x98] sm:$0xff]
          %v890 = vld [vmem:[#allocation2 + $0xa0] sm:$0xff]
          %v891 = vld [vmem:[#allocation2 + $0xa8] sm:$0xff]
          %v892 = vld [vmem:[#allocation2 + $0xb0] sm:$0xff]
          %v893 = vld [vmem:[#allocation2 + $0xb8] sm:$0xff]
          %v894 = vld [vmem:[#allocation2 + $0xc0] sm:$0xff]
          %v895 = vld [vmem:[#allocation2 + $0xc8] sm:$0xff]
          %v896 = vld [vmem:[#allocation2 + $0xd0] sm:$0xff]
          %v897 = vld [vmem:[#allocation2 + $0xd8] sm:$0xff]
          %v898 = vld [vmem:[#allocation2 + $0xe0] sm:$0xff]
          %v899 = vld [vmem:[#allocation2 + $0xe8] sm:$0xff]
          %v900 = vld [vmem:[#allocation2 + $0xf0] sm:$0xff]
          %v901 = vld [vmem:[#allocation2 + $0xf8] sm:$0xff]
          %v902 = vld [vmem:[%s2] sm:$0x1]
          %v904 = vperm.slane %v902, 0
          %v906 = vadd.f32 %v870, %v904
          %v907 = vadd.f32 %v871, %v904
          %v908 = vadd.f32 %v872, %v904
          %v909 = vadd.f32 %v873, %v904
          %v910 = vadd.f32 %v874, %v904
          %v911 = vadd.f32 %v875, %v904
          %v912 = vadd.f32 %v876, %v904
          %v913 = vadd.f32 %v877, %v904
          %v914 = vadd.f32 %v878, %v904
          %v915 = vadd.f32 %v879, %v904
          %v916 = vadd.f32 %v880, %v904
          %v917 = vadd.f32 %v881, %v904
          %v918 = vadd.f32 %v882, %v904
          %v919 = vadd.f32 %v883, %v904
          %v920 = vadd.f32 %v884, %v904
          %v921 = vadd.f32 %v885, %v904
          %v922 = vadd.f32 %v886, %v904
          %v923 = vadd.f32 %v887, %v904
          %v924 = vadd.f32 %v888, %v904
          %v925 = vadd.f32 %v889, %v904
          %v926 = vadd.f32 %v890, %v904
          %v927 = vadd.f32 %v891, %v904
          %v928 = vadd.f32 %v892, %v904
          %v929 = vadd.f32 %v893, %v904
          %v930 = vadd.f32 %v894, %v904
          %v931 = vadd.f32 %v895, %v904
          %v932 = vadd.f32 %v896, %v904
          %v933 = vadd.f32 %v897, %v904
          %v934 = vadd.f32 %v898, %v904
          %v935 = vadd.f32 %v899, %v904
          %v936 = vadd.f32 %v900, %v904
          %v937 = vadd.f32 %v901, %v904
          %v938 = vmax.f32 %v906, 0.0
          %v939 = vmax.f32 %v907, 0.0
          %v940 = vmax.f32 %v908, 0.0
          %v941 = vmax.f32 %v909, 0.0
          %v942 = vmax.f32 %v910, 0.0
          %v943 = vmax.f32 %v911, 0.0
          %v944 = vmax.f32 %v912, 0.0
          %v945 = vmax.f32 %v913, 0.0
          %v946 = vmax.f32 %v914, 0.0
          %v947 = vmax.f32 %v915, 0.0
          %v948 = vmax.f32 %v916, 0.0
          %v949 = vmax.f32 %v917, 0.0
          %v950 = vmax.f32 %v918, 0.0
          %v951 = vmax.f32 %v919, 0.0
          %v952 = vmax.f32 %v920, 0.0
          %v953 = vmax.f32 %v921, 0.0
          %v954 = vmax.f32 %v922, 0.0
          %v955 = vmax.f32 %v923, 0.0
          %v956 = vmax.f32 %v924, 0.0
          %v957 = vmax.f32 %v925, 0.0
          %v958 = vmax.f32 %v926, 0.0
          %v959 = vmax.f32 %v927, 0.0
          %v960 = vmax.f32 %v928, 0.0
          %v961 = vmax.f32 %v929, 0.0
          %v962 = vmax.f32 %v930, 0.0
          %v963 = vmax.f32 %v931, 0.0
          %v964 = vmax.f32 %v932, 0.0
          %v965 = vmax.f32 %v933, 0.0
          %v966 = vmax.f32 %v934, 0.0
          %v967 = vmax.f32 %v935, 0.0
          %v968 = vmax.f32 %v936, 0.0
          %v969 = vmax.f32 %v937, 0.0
          %970 = vst [vmem:[%s232] sm:$0xff] %v938
          %971 = vst [vmem:[%s232 + $0x8] sm:$0xff] %v939
          %972 = vst [vmem:[%s232 + $0x10] sm:$0xff] %v940
          %973 = vst [vmem:[%s232 + $0x18] sm:$0xff] %v941
          %974 = vst [vmem:[%s232 + $0x20] sm:$0xff] %v942
          %975 = vst [vmem:[%s232 + $0x28] sm:$0xff] %v943
          %976 = vst [vmem:[%s232 + $0x30] sm:$0xff] %v944
          %977 = vst [vmem:[%s232 + $0x38] sm:$0xff] %v945
          %978 = vst [vmem:[%s232 + $0x40] sm:$0xff] %v946
          %979 = vst [vmem:[%s232 + $0x48] sm:$0xff] %v947
          %980 = vst [vmem:[%s232 + $0x50] sm:$0xff] %v948
          %981 = vst [vmem:[%s232 + $0x58] sm:$0xff] %v949
          %982 = vst [vmem:[%s232 + $0x60] sm:$0xff] %v950
          %983 = vst [vmem:[%s232 + $0x68] sm:$0xff] %v951
          %984 = vst [vmem:[%s232 + $0x70] sm:$0xff] %v952
          %985 = vst [vmem:[%s232 + $0x78] sm:$0xff] %v953
          %986 = vst [vmem:[%s232 + $0x80] sm:$0xff] %v954
          %987 = vst [vmem:[%s232 + $0x88] sm:$0xff] %v955
          %988 = vst [vmem:[%s232 + $0x90] sm:$0xff] %v956
          %989 = vst [vmem:[%s232 + $0x98] sm:$0xff] %v957
          %990 = vst [vmem:[%s232 + $0xa0] sm:$0xff] %v958
          %991 = vst [vmem:[%s232 + $0xa8] sm:$0xff] %v959
          %992 = vst [vmem:[%s232 + $0xb0] sm:$0xff] %v960
          %993 = vst [vmem:[%s232 + $0xb8] sm:$0xff] %v961
          %994 = vst [vmem:[%s232 + $0xc0] sm:$0xff] %v962
          %995 = vst [vmem:[%s232 + $0xc8] sm:$0xff] %v963
          %996 = vst [vmem:[%s232 + $0xd0] sm:$0xff] %v964
          %997 = vst [vmem:[%s232 + $0xd8] sm:$0xff] %v965
          %998 = vst [vmem:[%s232 + $0xe0] sm:$0xff] %v966
          %999 = vst [vmem:[%s232 + $0xe8] sm:$0xff] %v967
          %1000 = vst [vmem:[%s232 + $0xf0] sm:$0xff] %v968
          %1001 = vst [vmem:[%s232 + $0xf8] sm:$0xff] %v969
        $region48: #{tpu_custom_call.1} parent=31 // pred_fallthru
          _
        %s1002 = sand.u32 %s116, 1
        %s1003 = scalar_lea.sflag [#allocation5], %s1002
        %s1004 = sand.u32 %s116, 1
        %s1005 = smul.addr %s1004, 256
        %s1006 = scalar_lea.vmem [#allocation8], %s1005
        // Predicated region
        $region49: #{tpu_custom_call.1} parent=31 // pred_check
          %p1007 = pneg %p126
        $region50: #{tpu_custom_call.1} parent=31 // pred_check_branch
          %1009 = sbr.rel (%p1007) target = $region52
        $region51: #{tpu_custom_call.1} parent=31 // pred_region
          %s1010 = smul.u32 32, %s25
          %1012 = vsyncadd %s1003, 0
          %s1013 = smul.addr %s1010, 8
          %s1014 = scalar_lea.hbm %s3, %s1013
          %s1015 = sshll.u32 %s1006, 4
          %s1016 = int_to_ptr.vmem [resolvable:$true] %s1015
          %s1017 = sshll.u32 %s1014, 4
          %s1018 = int_to_ptr.hbm [resolvable:$true] %s1017
          %1023 = dma.vmem_to_hbm [thread:$0]  %s1016, 4096, %s1018, %s1003, 128, 128, 8
        $region52: #{tpu_custom_call.1} parent=31 // pred_fallthru
          _
      $region32: #{tpu_custom_call.1} parent=5 // pred_fallthru
        _
      %p1024 = scmp.le.s32.totalorder 2, %s16
      // Predicated region
      $region53: #{tpu_custom_call.1} parent=5 // pred_check
        %p1025 = pneg %p1024
      $region54: #{tpu_custom_call.1} parent=5 // pred_check_branch
        %1027 = sbr.rel (%p1025) target = $region56
      $region55: #{tpu_custom_call.1} parent=5 // pred_region
        %s1028 = ssub.s32 %s16, 2
        // Predicated region
        $region57: #{tpu_custom_call.1} parent=55 // pred_check
          %p1029 = pneg %p132
        $region58: #{tpu_custom_call.1} parent=55 // pred_check_branch
          %1031 = sbr.rel (%p1029) target = $region60
        $region59: #{tpu_custom_call.1} parent=55 // pred_region
          %s1032 = sand.u32 %s117, 1
          %s1033 = scalar_lea.sflag [#allocation5], %s1032
          %s1034 = sand.u32 %s117, 1
          %s1035 = smul.addr %s1034, 256
          %s1036 = scalar_lea.vmem [#allocation8], %s1035
          %1038 = dma.done %s1033, 4096
        $region60: #{tpu_custom_call.1} parent=55 // pred_fallthru
          _
      $region56: #{tpu_custom_call.1} parent=5 // pred_fallthru
        _
    $region6: #{tpu_custom_call.1} parent=1 // loop_footer
      %s20 = sadd.s32 1, %s16
    $region7: #{tpu_custom_call.1} parent=1 // loop_footer_branch
      %15 = sbr.rel target = $region3
    $region8: #{tpu_custom_call.1} parent=1 // loop_exit
      _
    %1039 = vsyncpa [#allocation4], 1
    %s1040 = scalar_lea.sflag [#allocation4], 1
    %1041 = vsyncpa %s1040, 1
    %1042 = vsyncpa [#allocation7], 1
    %1043 = vsyncpa [#allocation5], 1
    %s1044 = scalar_lea.sflag [#allocation5], 1
    %1045 = vsyncpa %s1044, 1

</llo_original>
